<compile_context>
chip_gen: v7x
topology: tpu7x:2x2x1
jax: 0.10.0
libtpu: 0.0.40
codegen_flags: <defaults>
</compile_context>

<pallas_src>
import numpy as np
import jax
import jax.numpy as jnp
from jax import lax
from jax.experimental import pallas as pl
from jax.experimental.pallas import tpu as pltpu


def _make_lstm_kernel(T, B, I, H):
    """Fully-unrolled single-layer LSTM kernel for static (T, B, I, H)."""

    def kernel(x_ref, w_ref, s_ref, out_ref):
        # x_ref  : (T, B, I)     time-major input sequence, f32
        # w_ref  : (I+H+1, 4H)   packed [W_ih ; W_hh ; b] slab, f32, gate order i,f,g,o
        # s_ref  : (2, B, H)     packed [h0 ; c0]
        # out_ref: (2, B, H)     packed [hT ; cT]

        # Weights: cast MXU operands to bf16 ONCE, outside the recurrence.
        w_ih = w_ref[0:I, :].astype(jnp.bfloat16)            # (I, 4H)
        w_hh = w_ref[I:I + H, :].astype(jnp.bfloat16)        # (H, 4H)
        b = jnp.broadcast_to(w_ref[I + H:I + H + 1, :], (B, 4 * H))  # (B, 4H) f32, hoisted

        # Hoisted input projection + bias (independent of h/c -> off the serial
        # critical path; the LLO scheduler overlaps these with the recurrence).
        xproj = [
            jnp.dot(x_ref[t].astype(jnp.bfloat16), w_ih,
                    preferred_element_type=jnp.float32) + b      # (B, 4H) f32
            for t in range(T)
        ]

        h = s_ref[0]                                          # (B, H) f32
        c = s_ref[1]                                          # (B, H) f32

        # Fully-unrolled recurrence: one bf16 (B,H)@(H,4H) matmul + two EUP
        # pushes on the lane-dense gates per step; all gate slices are static.
        for t in range(T):
            gates = xproj[t] + jnp.dot(h.astype(jnp.bfloat16), w_hh,
                                       preferred_element_type=jnp.float32)  # (B, 4H) f32
            sig = 0.5 * jnp.tanh(0.5 * gates) + 0.5           # sigmoid via one tanh push
            th = jnp.tanh(gates)
            i_g = sig[:, 0 * H:1 * H]
            f_g = sig[:, 1 * H:2 * H]
            g_g = th[:, 2 * H:3 * H]
            o_g = sig[:, 3 * H:4 * H]
            c = f_g * c + i_g * g_g
            h = o_g * jnp.tanh(c)

        out_ref[0] = h
        out_ref[1] = c

    return kernel


def lstm_forward(x, w_slab, state0):
    """Pallas call wrapper: 3 inputs, 1 packed output, whole arrays as VMEM blocks."""
    T, B, I = x.shape
    H = state0.shape[-1]
    vmem = pl.BlockSpec(memory_space=pltpu.MemorySpace.VMEM)
    return pl.pallas_call(
        _make_lstm_kernel(T, B, I, H),
        out_shape=jax.ShapeDtypeStruct((2, B, H), jnp.float32),
        in_specs=[vmem, vmem, vmem],
        out_specs=vmem,
    )(x, w_slab, state0)


def lstm_reference(x, w_slab, state0, I, H):
    """Pure-JAX f32 reference (same math as torch.nn.LSTM, num_layers=1)."""
    w_ih = w_slab[0:I]
    w_hh = w_slab[I:I + H]
    b = w_slab[I + H]

    def step(carry, x_t):
        h, c = carry
        gates = x_t @ w_ih + h @ w_hh + b
        i_g = jax.nn.sigmoid(gates[:, 0 * H:1 * H])
        f_g = jax.nn.sigmoid(gates[:, 1 * H:2 * H])
        g_g = jnp.tanh(gates[:, 2 * H:3 * H])
        o_g = jax.nn.sigmoid(gates[:, 3 * H:4 * H])
        c_new = f_g * c + i_g * g_g
        h_new = o_g * jnp.tanh(c_new)
        return (h_new, c_new), h_new

    (hT, cT), outs = lax.scan(step, (state0[0], state0[1]), x)
    return outs, hT, cT


class MusicGenerator:
    """JAX/Pallas re-implementation of SingLS MusicGenerator (forward pass).

    Note: forward() mutates self.hidden (mirrors the PyTorch module); keep the
    state functional if this ever gets wrapped in jax.jit/scan end-to-end.
    """

    def __init__(self, hidden_size, output_size, attention_type='none', *, key):
        self.hidden_size = hidden_size
        self.output_size = output_size
        self.attention_type = attention_type
        self.hidden = None

        keys = jax.random.split(key, 6)
        k = 1.0 / np.sqrt(hidden_size)   # PyTorch LSTM default init: U(-1/sqrt(H), 1/sqrt(H))
        H, I = hidden_size, output_size
        w_ih = jax.random.uniform(keys[0], (4 * H, I), jnp.float32, -k, k)   # gate order i,f,g,o
        w_hh = jax.random.uniform(keys[1], (4 * H, H), jnp.float32, -k, k)
        b_ih = jax.random.uniform(keys[2], (4 * H,), jnp.float32, -k, k)
        b_hh = jax.random.uniform(keys[3], (4 * H,), jnp.float32, -k, k)

        # Repack ONCE into a single right-multiply weight slab:
        #   rows [0, I)        -> W_ih^T  (I, 4H)
        #   rows [I, I+H)      -> W_hh^T  (H, 4H)
        #   row  [I+H]         -> b_ih + b_hh  (1, 4H)
        self.w_slab = jnp.concatenate(
            [jnp.transpose(w_ih), jnp.transpose(w_hh), (b_ih + b_hh)[None, :]],
            axis=0).astype(jnp.float32)

        # nn.Linear(2, 1) attention params (mirrors __init__; unused on the 'none' path).
        ka = 1.0 / np.sqrt(2.0)
        self.attn_w = jax.random.uniform(keys[4], (1, 2), jnp.float32, -ka, ka)
        self.attn_b = jax.random.uniform(keys[5], (1,), jnp.float32, -ka, ka)

    def init_hidden(self, batch_size):
        h = jnp.zeros((1, batch_size, self.hidden_size), jnp.float32)
        self.hidden = (h, h)

    def set_random_hidden(self, batch_size, *, key):
        h = jax.random.normal(key, (1, batch_size, self.hidden_size), jnp.float32)
        self.hidden = (h, h)

    def forward(self, in_put, batch_size, prev_sequence, batched_ssm):
        h0, c0 = self.hidden
        x = in_put if in_put.dtype == jnp.float32 else in_put.astype(jnp.float32)
        state0 = jnp.concatenate([h0, c0], axis=0)            # (2, B, H) packed state
        state1 = lstm_forward(x, self.w_slab, state0)         # (2, B, H)
        ht = state1[0:1]                                      # (1, B, H)
        ct = state1[1:2]                                      # (1, B, H)
        self.hidden = (ht, ct)

        # PyTorch: output[-1].unsqueeze(1).transpose(0,1) == h_T with shape (1,B,H);
        # for a single-layer LSTM output[-1] is exactly h_T, so no (T,B,H) sequence
        # is ever materialized on the 'none' path.
        if self.attention_type == 'none':
            return ht, self.hidden
        # TODO(synk): 'original' (original_attention + Sparsemax) and 'lsa'
        #             (LearnedStructuredAttention) paths use external modules not
        #             provided with the spec; they also need the full per-step output.
        raise ValueError(f"Unknown attention type: {self.attention_type}")


if __name__ == "__main__":
    key = jax.random.PRNGKey(0)
    k_model, k_x, k_prev, k_ssm = jax.random.split(key, 4)

    T, B = 8, 2
    hidden_size, output_size = 32, 16

    model = MusicGenerator(hidden_size, output_size, attention_type='none', key=k_model)
    model.init_hidden(B)

    in_put = jax.random.normal(k_x, (T, B, output_size), jnp.float32)
    prev_sequence = jax.random.normal(k_prev, (T, B, output_size), jnp.float32)
    batched_ssm = jax.random.normal(k_ssm, (B * T, T), jnp.float32)

    attn_out, (hT, cT) = model.forward(in_put, B, prev_sequence, batched_ssm)
    jax.block_until_ready((attn_out, hT, cT))

    # Cross-check the Pallas LSTM against a pure-f32 JAX reference.
    # The kernel feeds the MXU bf16 operands (f32 accumulation), so the
    # tolerance is relaxed vs. the previous all-f32 kernel.
    h0 = jnp.zeros((B, hidden_size), jnp.float32)
    state0 = jnp.stack([h0, h0], axis=0)
    ref_out, ref_h, ref_c = lstm_reference(in_put, model.w_slab, state0,
                                           output_size, hidden_size)

    assert attn_out.shape == (1, B, hidden_size)
    assert hT.shape == (1, B, hidden_size) and cT.shape == (1, B, hidden_size)
    np.testing.assert_allclose(np.asarray(attn_out[0]), np.asarray(ref_h),
                               atol=2e-2, rtol=2e-2)
    np.testing.assert_allclose(np.asarray(hT[0]), np.asarray(ref_h),
                               atol=2e-2, rtol=2e-2)
    np.testing.assert_allclose(np.asarray(cT[0]), np.asarray(ref_c),
                               atol=2e-2, rtol=2e-2)

    print("KERNEL_OK")
</pallas_src>

<mosaic_0001>
module attributes {stable_mosaic.version = 11 : i64} {
  func.func @kernel(%arg0: memref<8x2x16xf32, #tpu.memory_space<vmem>>, %arg1: memref<49x128xf32, #tpu.memory_space<vmem>>, %arg2: memref<2x2x32xf32, #tpu.memory_space<vmem>>, %arg3: memref<2x2x32xf32, #tpu.memory_space<vmem>>) attributes {dimension_semantics = [], scalar_prefetch = 0 : i64, scratch_operands = 0 : i64, tpu.core_type = #tpu.core_type<tc>} {
    %c0 = arith.constant 0 : index
    %c0_0 = arith.constant 0 : index
    %0 = vector.load %arg1[%c0, %c0_0] : memref<49x128xf32, #tpu.memory_space<vmem>>, vector<16x128xf32>
    %1 = arith.truncf %0 : vector<16x128xf32> to vector<16x128xbf16>
    %c16 = arith.constant 16 : index
    %c0_1 = arith.constant 0 : index
    %2 = vector.load %arg1[%c16, %c0_1] : memref<49x128xf32, #tpu.memory_space<vmem>>, vector<32x128xf32>
    %3 = arith.truncf %2 : vector<32x128xf32> to vector<32x128xbf16>
    %c48 = arith.constant 48 : index
    %c0_2 = arith.constant 0 : index
    %4 = vector.load %arg1[%c48, %c0_2] : memref<49x128xf32, #tpu.memory_space<vmem>>, vector<1x128xf32>
    %5 = vector.shape_cast %4 : vector<1x128xf32> to vector<1x128xf32>
    %6 = vector.broadcast %5 : vector<1x128xf32> to vector<2x128xf32>
    %c0_3 = arith.constant 0 : index
    %c0_4 = arith.constant 0 : index
    %c0_5 = arith.constant 0 : index
    %7 = vector.load %arg0[%c0_3, %c0_4, %c0_5] : memref<8x2x16xf32, #tpu.memory_space<vmem>>, vector<1x2x16xf32>
    %8 = vector.shape_cast %7 : vector<1x2x16xf32> to vector<2x16xf32>
    %9 = arith.truncf %8 : vector<2x16xf32> to vector<2x16xbf16>
    %cst = arith.constant dense<0.000000e+00> : vector<2x128xf32>
    %10 = tpu.matmul %9, %1, %cst {dimension_numbers = #tpu.dot_dimension_numbers<[1], [0], [0], [1], [0, 0, 1, 1], [], []>} : vector<2x16xbf16>, vector<16x128xbf16>, vector<2x128xf32> -> vector<2x128xf32>
    %11 = arith.addf %10, %6 : vector<2x128xf32>
    %c1 = arith.constant 1 : index
    %c0_6 = arith.constant 0 : index
    %c0_7 = arith.constant 0 : index
    %12 = vector.load %arg0[%c1, %c0_6, %c0_7] : memref<8x2x16xf32, #tpu.memory_space<vmem>>, vector<1x2x16xf32>
    %13 = vector.shape_cast %12 : vector<1x2x16xf32> to vector<2x16xf32>
    %14 = arith.truncf %13 : vector<2x16xf32> to vector<2x16xbf16>
    %cst_8 = arith.constant dense<0.000000e+00> : vector<2x128xf32>
    %15 = tpu.matmul %14, %1, %cst_8 {dimension_numbers = #tpu.dot_dimension_numbers<[1], [0], [0], [1], [0, 0, 1, 1], [], []>} : vector<2x16xbf16>, vector<16x128xbf16>, vector<2x128xf32> -> vector<2x128xf32>
    %16 = arith.addf %15, %6 : vector<2x128xf32>
    %c2 = arith.constant 2 : index
    %c0_9 = arith.constant 0 : index
    %c0_10 = arith.constant 0 : index
    %17 = vector.load %arg0[%c2, %c0_9, %c0_10] : memref<8x2x16xf32, #tpu.memory_space<vmem>>, vector<1x2x16xf32>
    %18 = vector.shape_cast %17 : vector<1x2x16xf32> to vector<2x16xf32>
    %19 = arith.truncf %18 : vector<2x16xf32> to vector<2x16xbf16>
    %cst_11 = arith.constant dense<0.000000e+00> : vector<2x128xf32>
    %20 = tpu.matmul %19, %1, %cst_11 {dimension_numbers = #tpu.dot_dimension_numbers<[1], [0], [0], [1], [0, 0, 1, 1], [], []>} : vector<2x16xbf16>, vector<16x128xbf16>, vector<2x128xf32> -> vector<2x128xf32>
    %21 = arith.addf %20, %6 : vector<2x128xf32>
    %c3 = arith.constant 3 : index
    %c0_12 = arith.constant 0 : index
    %c0_13 = arith.constant 0 : index
    %22 = vector.load %arg0[%c3, %c0_12, %c0_13] : memref<8x2x16xf32, #tpu.memory_space<vmem>>, vector<1x2x16xf32>
    %23 = vector.shape_cast %22 : vector<1x2x16xf32> to vector<2x16xf32>
    %24 = arith.truncf %23 : vector<2x16xf32> to vector<2x16xbf16>
    %cst_14 = arith.constant dense<0.000000e+00> : vector<2x128xf32>
    %25 = tpu.matmul %24, %1, %cst_14 {dimension_numbers = #tpu.dot_dimension_numbers<[1], [0], [0], [1], [0, 0, 1, 1], [], []>} : vector<2x16xbf16>, vector<16x128xbf16>, vector<2x128xf32> -> vector<2x128xf32>
    %26 = arith.addf %25, %6 : vector<2x128xf32>
    %c4 = arith.constant 4 : index
    %c0_15 = arith.constant 0 : index
    %c0_16 = arith.constant 0 : index
    %27 = vector.load %arg0[%c4, %c0_15, %c0_16] : memref<8x2x16xf32, #tpu.memory_space<vmem>>, vector<1x2x16xf32>
    %28 = vector.shape_cast %27 : vector<1x2x16xf32> to vector<2x16xf32>
    %29 = arith.truncf %28 : vector<2x16xf32> to vector<2x16xbf16>
    %cst_17 = arith.constant dense<0.000000e+00> : vector<2x128xf32>
    %30 = tpu.matmul %29, %1, %cst_17 {dimension_numbers = #tpu.dot_dimension_numbers<[1], [0], [0], [1], [0, 0, 1, 1], [], []>} : vector<2x16xbf16>, vector<16x128xbf16>, vector<2x128xf32> -> vector<2x128xf32>
    %31 = arith.addf %30, %6 : vector<2x128xf32>
    %c5 = arith.constant 5 : index
    %c0_18 = arith.constant 0 : index
    %c0_19 = arith.constant 0 : index
    %32 = vector.load %arg0[%c5, %c0_18, %c0_19] : memref<8x2x16xf32, #tpu.memory_space<vmem>>, vector<1x2x16xf32>
    %33 = vector.shape_cast %32 : vector<1x2x16xf32> to vector<2x16xf32>
    %34 = arith.truncf %33 : vector<2x16xf32> to vector<2x16xbf16>
    %cst_20 = arith.constant dense<0.000000e+00> : vector<2x128xf32>
    %35 = tpu.matmul %34, %1, %cst_20 {dimension_numbers = #tpu.dot_dimension_numbers<[1], [0], [0], [1], [0, 0, 1, 1], [], []>} : vector<2x16xbf16>, vector<16x128xbf16>, vector<2x128xf32> -> vector<2x128xf32>
    %36 = arith.addf %35, %6 : vector<2x128xf32>
    %c6 = arith.constant 6 : index
    %c0_21 = arith.constant 0 : index
    %c0_22 = arith.constant 0 : index
    %37 = vector.load %arg0[%c6, %c0_21, %c0_22] : memref<8x2x16xf32, #tpu.memory_space<vmem>>, vector<1x2x16xf32>
    %38 = vector.shape_cast %37 : vector<1x2x16xf32> to vector<2x16xf32>
    %39 = arith.truncf %38 : vector<2x16xf32> to vector<2x16xbf16>
    %cst_23 = arith.constant dense<0.000000e+00> : vector<2x128xf32>
    %40 = tpu.matmul %39, %1, %cst_23 {dimension_numbers = #tpu.dot_dimension_numbers<[1], [0], [0], [1], [0, 0, 1, 1], [], []>} : vector<2x16xbf16>, vector<16x128xbf16>, vector<2x128xf32> -> vector<2x128xf32>
    %41 = arith.addf %40, %6 : vector<2x128xf32>
    %c7 = arith.constant 7 : index
    %c0_24 = arith.constant 0 : index
    %c0_25 = arith.constant 0 : index
    %42 = vector.load %arg0[%c7, %c0_24, %c0_25] : memref<8x2x16xf32, #tpu.memory_space<vmem>>, vector<1x2x16xf32>
    %43 = vector.shape_cast %42 : vector<1x2x16xf32> to vector<2x16xf32>
    %44 = arith.truncf %43 : vector<2x16xf32> to vector<2x16xbf16>
    %cst_26 = arith.constant dense<0.000000e+00> : vector<2x128xf32>
    %45 = tpu.matmul %44, %1, %cst_26 {dimension_numbers = #tpu.dot_dimension_numbers<[1], [0], [0], [1], [0, 0, 1, 1], [], []>} : vector<2x16xbf16>, vector<16x128xbf16>, vector<2x128xf32> -> vector<2x128xf32>
    %46 = arith.addf %45, %6 : vector<2x128xf32>
    %c0_27 = arith.constant 0 : index
    %c0_28 = arith.constant 0 : index
    %c0_29 = arith.constant 0 : index
    %47 = vector.load %arg2[%c0_27, %c0_28, %c0_29] : memref<2x2x32xf32, #tpu.memory_space<vmem>>, vector<1x2x32xf32>
    %48 = vector.shape_cast %47 : vector<1x2x32xf32> to vector<2x32xf32>
    %c1_30 = arith.constant 1 : index
    %c0_31 = arith.constant 0 : index
    %c0_32 = arith.constant 0 : index
    %49 = vector.load %arg2[%c1_30, %c0_31, %c0_32] : memref<2x2x32xf32, #tpu.memory_space<vmem>>, vector<1x2x32xf32>
    %50 = vector.shape_cast %49 : vector<1x2x32xf32> to vector<2x32xf32>
    %51 = arith.truncf %48 : vector<2x32xf32> to vector<2x32xbf16>
    %cst_33 = arith.constant dense<0.000000e+00> : vector<2x128xf32>
    %52 = tpu.matmul %51, %3, %cst_33 {dimension_numbers = #tpu.dot_dimension_numbers<[1], [0], [0], [1], [0, 0, 1, 1], [], []>} : vector<2x32xbf16>, vector<32x128xbf16>, vector<2x128xf32> -> vector<2x128xf32>
    %53 = arith.addf %11, %52 : vector<2x128xf32>
    %cst_34 = arith.constant 5.000000e-01 : f32
    %54 = vector.broadcast %cst_34 : f32 to vector<2x128xf32>
    %55 = arith.mulf %54, %53 : vector<2x128xf32>
    %56 = math.tanh %55 : vector<2x128xf32>
    %cst_35 = arith.constant 5.000000e-01 : f32
    %57 = vector.broadcast %cst_35 : f32 to vector<2x128xf32>
    %58 = arith.mulf %57, %56 : vector<2x128xf32>
    %cst_36 = arith.constant 5.000000e-01 : f32
    %59 = vector.broadcast %cst_36 : f32 to vector<2x128xf32>
    %60 = arith.addf %58, %59 : vector<2x128xf32>
    %61 = math.tanh %53 : vector<2x128xf32>
    %62 = vector.extract_strided_slice %60 {offsets = [0, 0], sizes = [2, 32], strides = [1, 1]} : vector<2x128xf32> to vector<2x32xf32>
    %63 = vector.extract_strided_slice %60 {offsets = [0, 32], sizes = [2, 32], strides = [1, 1]} : vector<2x128xf32> to vector<2x32xf32>
    %64 = vector.extract_strided_slice %61 {offsets = [0, 64], sizes = [2, 32], strides = [1, 1]} : vector<2x128xf32> to vector<2x32xf32>
    %65 = vector.extract_strided_slice %60 {offsets = [0, 96], sizes = [2, 32], strides = [1, 1]} : vector<2x128xf32> to vector<2x32xf32>
    %66 = arith.mulf %63, %50 : vector<2x32xf32>
    %67 = arith.mulf %62, %64 : vector<2x32xf32>
    %68 = arith.addf %66, %67 : vector<2x32xf32>
    %69 = math.tanh %68 : vector<2x32xf32>
    %70 = arith.mulf %65, %69 : vector<2x32xf32>
    %71 = arith.truncf %70 : vector<2x32xf32> to vector<2x32xbf16>
    %cst_37 = arith.constant dense<0.000000e+00> : vector<2x128xf32>
    %72 = tpu.matmul %71, %3, %cst_37 {dimension_numbers = #tpu.dot_dimension_numbers<[1], [0], [0], [1], [0, 0, 1, 1], [], []>} : vector<2x32xbf16>, vector<32x128xbf16>, vector<2x128xf32> -> vector<2x128xf32>
    %73 = arith.addf %16, %72 : vector<2x128xf32>
    %cst_38 = arith.constant 5.000000e-01 : f32
    %74 = vector.broadcast %cst_38 : f32 to vector<2x128xf32>
    %75 = arith.mulf %74, %73 : vector<2x128xf32>
    %76 = math.tanh %75 : vector<2x128xf32>
    %cst_39 = arith.constant 5.000000e-01 : f32
    %77 = vector.broadcast %cst_39 : f32 to vector<2x128xf32>
    %78 = arith.mulf %77, %76 : vector<2x128xf32>
    %cst_40 = arith.constant 5.000000e-01 : f32
    %79 = vector.broadcast %cst_40 : f32 to vector<2x128xf32>
    %80 = arith.addf %78, %79 : vector<2x128xf32>
    %81 = math.tanh %73 : vector<2x128xf32>
    %82 = vector.extract_strided_slice %80 {offsets = [0, 0], sizes = [2, 32], strides = [1, 1]} : vector<2x128xf32> to vector<2x32xf32>
    %83 = vector.extract_strided_slice %80 {offsets = [0, 32], sizes = [2, 32], strides = [1, 1]} : vector<2x128xf32> to vector<2x32xf32>
    %84 = vector.extract_strided_slice %81 {offsets = [0, 64], sizes = [2, 32], strides = [1, 1]} : vector<2x128xf32> to vector<2x32xf32>
    %85 = vector.extract_strided_slice %80 {offsets = [0, 96], sizes = [2, 32], strides = [1, 1]} : vector<2x128xf32> to vector<2x32xf32>
    %86 = arith.mulf %83, %68 : vector<2x32xf32>
    %87 = arith.mulf %82, %84 : vector<2x32xf32>
    %88 = arith.addf %86, %87 : vector<2x32xf32>
    %89 = math.tanh %88 : vector<2x32xf32>
    %90 = arith.mulf %85, %89 : vector<2x32xf32>
    %91 = arith.truncf %90 : vector<2x32xf32> to vector<2x32xbf16>
    %cst_41 = arith.constant dense<0.000000e+00> : vector<2x128xf32>
    %92 = tpu.matmul %91, %3, %cst_41 {dimension_numbers = #tpu.dot_dimension_numbers<[1], [0], [0], [1], [0, 0, 1, 1], [], []>} : vector<2x32xbf16>, vector<32x128xbf16>, vector<2x128xf32> -> vector<2x128xf32>
    %93 = arith.addf %21, %92 : vector<2x128xf32>
    %cst_42 = arith.constant 5.000000e-01 : f32
    %94 = vector.broadcast %cst_42 : f32 to vector<2x128xf32>
    %95 = arith.mulf %94, %93 : vector<2x128xf32>
    %96 = math.tanh %95 : vector<2x128xf32>
    %cst_43 = arith.constant 5.000000e-01 : f32
    %97 = vector.broadcast %cst_43 : f32 to vector<2x128xf32>
    %98 = arith.mulf %97, %96 : vector<2x128xf32>
    %cst_44 = arith.constant 5.000000e-01 : f32
    %99 = vector.broadcast %cst_44 : f32 to vector<2x128xf32>
    %100 = arith.addf %98, %99 : vector<2x128xf32>
    %101 = math.tanh %93 : vector<2x128xf32>
    %102 = vector.extract_strided_slice %100 {offsets = [0, 0], sizes = [2, 32], strides = [1, 1]} : vector<2x128xf32> to vector<2x32xf32>
    %103 = vector.extract_strided_slice %100 {offsets = [0, 32], sizes = [2, 32], strides = [1, 1]} : vector<2x128xf32> to vector<2x32xf32>
    %104 = vector.extract_strided_slice %101 {offsets = [0, 64], sizes = [2, 32], strides = [1, 1]} : vector<2x128xf32> to vector<2x32xf32>
    %105 = vector.extract_strided_slice %100 {offsets = [0, 96], sizes = [2, 32], strides = [1, 1]} : vector<2x128xf32> to vector<2x32xf32>
    %106 = arith.mulf %103, %88 : vector<2x32xf32>
    %107 = arith.mulf %102, %104 : vector<2x32xf32>
    %108 = arith.addf %106, %107 : vector<2x32xf32>
    %109 = math.tanh %108 : vector<2x32xf32>
    %110 = arith.mulf %105, %109 : vector<2x32xf32>
    %111 = arith.truncf %110 : vector<2x32xf32> to vector<2x32xbf16>
    %cst_45 = arith.constant dense<0.000000e+00> : vector<2x128xf32>
    %112 = tpu.matmul %111, %3, %cst_45 {dimension_numbers = #tpu.dot_dimension_numbers<[1], [0], [0], [1], [0, 0, 1, 1], [], []>} : vector<2x32xbf16>, vector<32x128xbf16>, vector<2x128xf32> -> vector<2x128xf32>
    %113 = arith.addf %26, %112 : vector<2x128xf32>
    %cst_46 = arith.constant 5.000000e-01 : f32
    %114 = vector.broadcast %cst_46 : f32 to vector<2x128xf32>
    %115 = arith.mulf %114, %113 : vector<2x128xf32>
    %116 = math.tanh %115 : vector<2x128xf32>
    %cst_47 = arith.constant 5.000000e-01 : f32
    %117 = vector.broadcast %cst_47 : f32 to vector<2x128xf32>
    %118 = arith.mulf %117, %116 : vector<2x128xf32>
    %cst_48 = arith.constant 5.000000e-01 : f32
    %119 = vector.broadcast %cst_48 : f32 to vector<2x128xf32>
    %120 = arith.addf %118, %119 : vector<2x128xf32>
    %121 = math.tanh %113 : vector<2x128xf32>
    %122 = vector.extract_strided_slice %120 {offsets = [0, 0], sizes = [2, 32], strides = [1, 1]} : vector<2x128xf32> to vector<2x32xf32>
    %123 = vector.extract_strided_slice %120 {offsets = [0, 32], sizes = [2, 32], strides = [1, 1]} : vector<2x128xf32> to vector<2x32xf32>
    %124 = vector.extract_strided_slice %121 {offsets = [0, 64], sizes = [2, 32], strides = [1, 1]} : vector<2x128xf32> to vector<2x32xf32>
    %125 = vector.extract_strided_slice %120 {offsets = [0, 96], sizes = [2, 32], strides = [1, 1]} : vector<2x128xf32> to vector<2x32xf32>
    %126 = arith.mulf %123, %108 : vector<2x32xf32>
    %127 = arith.mulf %122, %124 : vector<2x32xf32>
    %128 = arith.addf %126, %127 : vector<2x32xf32>
    %129 = math.tanh %128 : vector<2x32xf32>
    %130 = arith.mulf %125, %129 : vector<2x32xf32>
    %131 = arith.truncf %130 : vector<2x32xf32> to vector<2x32xbf16>
    %cst_49 = arith.constant dense<0.000000e+00> : vector<2x128xf32>
    %132 = tpu.matmul %131, %3, %cst_49 {dimension_numbers = #tpu.dot_dimension_numbers<[1], [0], [0], [1], [0, 0, 1, 1], [], []>} : vector<2x32xbf16>, vector<32x128xbf16>, vector<2x128xf32> -> vector<2x128xf32>
    %133 = arith.addf %31, %132 : vector<2x128xf32>
    %cst_50 = arith.constant 5.000000e-01 : f32
    %134 = vector.broadcast %cst_50 : f32 to vector<2x128xf32>
    %135 = arith.mulf %134, %133 : vector<2x128xf32>
    %136 = math.tanh %135 : vector<2x128xf32>
    %cst_51 = arith.constant 5.000000e-01 : f32
    %137 = vector.broadcast %cst_51 : f32 to vector<2x128xf32>
    %138 = arith.mulf %137, %136 : vector<2x128xf32>
    %cst_52 = arith.constant 5.000000e-01 : f32
    %139 = vector.broadcast %cst_52 : f32 to vector<2x128xf32>
    %140 = arith.addf %138, %139 : vector<2x128xf32>
    %141 = math.tanh %133 : vector<2x128xf32>
    %142 = vector.extract_strided_slice %140 {offsets = [0, 0], sizes = [2, 32], strides = [1, 1]} : vector<2x128xf32> to vector<2x32xf32>
    %143 = vector.extract_strided_slice %140 {offsets = [0, 32], sizes = [2, 32], strides = [1, 1]} : vector<2x128xf32> to vector<2x32xf32>
    %144 = vector.extract_strided_slice %141 {offsets = [0, 64], sizes = [2, 32], strides = [1, 1]} : vector<2x128xf32> to vector<2x32xf32>
    %145 = vector.extract_strided_slice %140 {offsets = [0, 96], sizes = [2, 32], strides = [1, 1]} : vector<2x128xf32> to vector<2x32xf32>
    %146 = arith.mulf %143, %128 : vector<2x32xf32>
    %147 = arith.mulf %142, %144 : vector<2x32xf32>
    %148 = arith.addf %146, %147 : vector<2x32xf32>
    %149 = math.tanh %148 : vector<2x32xf32>
    %150 = arith.mulf %145, %149 : vector<2x32xf32>
    %151 = arith.truncf %150 : vector<2x32xf32> to vector<2x32xbf16>
    %cst_53 = arith.constant dense<0.000000e+00> : vector<2x128xf32>
    %152 = tpu.matmul %151, %3, %cst_53 {dimension_numbers = #tpu.dot_dimension_numbers<[1], [0], [0], [1], [0, 0, 1, 1], [], []>} : vector<2x32xbf16>, vector<32x128xbf16>, vector<2x128xf32> -> vector<2x128xf32>
    %153 = arith.addf %36, %152 : vector<2x128xf32>
    %cst_54 = arith.constant 5.000000e-01 : f32
    %154 = vector.broadcast %cst_54 : f32 to vector<2x128xf32>
    %155 = arith.mulf %154, %153 : vector<2x128xf32>
    %156 = math.tanh %155 : vector<2x128xf32>
    %cst_55 = arith.constant 5.000000e-01 : f32
    %157 = vector.broadcast %cst_55 : f32 to vector<2x128xf32>
    %158 = arith.mulf %157, %156 : vector<2x128xf32>
    %cst_56 = arith.constant 5.000000e-01 : f32
    %159 = vector.broadcast %cst_56 : f32 to vector<2x128xf32>
    %160 = arith.addf %158, %159 : vector<2x128xf32>
    %161 = math.tanh %153 : vector<2x128xf32>
    %162 = vector.extract_strided_slice %160 {offsets = [0, 0], sizes = [2, 32], strides = [1, 1]} : vector<2x128xf32> to vector<2x32xf32>
    %163 = vector.extract_strided_slice %160 {offsets = [0, 32], sizes = [2, 32], strides = [1, 1]} : vector<2x128xf32> to vector<2x32xf32>
    %164 = vector.extract_strided_slice %161 {offsets = [0, 64], sizes = [2, 32], strides = [1, 1]} : vector<2x128xf32> to vector<2x32xf32>
    %165 = vector.extract_strided_slice %160 {offsets = [0, 96], sizes = [2, 32], strides = [1, 1]} : vector<2x128xf32> to vector<2x32xf32>
    %166 = arith.mulf %163, %148 : vector<2x32xf32>
    %167 = arith.mulf %162, %164 : vector<2x32xf32>
    %168 = arith.addf %166, %167 : vector<2x32xf32>
    %169 = math.tanh %168 : vector<2x32xf32>
    %170 = arith.mulf %165, %169 : vector<2x32xf32>
    %171 = arith.truncf %170 : vector<2x32xf32> to vector<2x32xbf16>
    %cst_57 = arith.constant dense<0.000000e+00> : vector<2x128xf32>
    %172 = tpu.matmul %171, %3, %cst_57 {dimension_numbers = #tpu.dot_dimension_numbers<[1], [0], [0], [1], [0, 0, 1, 1], [], []>} : vector<2x32xbf16>, vector<32x128xbf16>, vector<2x128xf32> -> vector<2x128xf32>
    %173 = arith.addf %41, %172 : vector<2x128xf32>
    %cst_58 = arith.constant 5.000000e-01 : f32
    %174 = vector.broadcast %cst_58 : f32 to vector<2x128xf32>
    %175 = arith.mulf %174, %173 : vector<2x128xf32>
    %176 = math.tanh %175 : vector<2x128xf32>
    %cst_59 = arith.constant 5.000000e-01 : f32
    %177 = vector.broadcast %cst_59 : f32 to vector<2x128xf32>
    %178 = arith.mulf %177, %176 : vector<2x128xf32>
    %cst_60 = arith.constant 5.000000e-01 : f32
    %179 = vector.broadcast %cst_60 : f32 to vector<2x128xf32>
    %180 = arith.addf %178, %179 : vector<2x128xf32>
    %181 = math.tanh %173 : vector<2x128xf32>
    %182 = vector.extract_strided_slice %180 {offsets = [0, 0], sizes = [2, 32], strides = [1, 1]} : vector<2x128xf32> to vector<2x32xf32>
    %183 = vector.extract_strided_slice %180 {offsets = [0, 32], sizes = [2, 32], strides = [1, 1]} : vector<2x128xf32> to vector<2x32xf32>
    %184 = vector.extract_strided_slice %181 {offsets = [0, 64], sizes = [2, 32], strides = [1, 1]} : vector<2x128xf32> to vector<2x32xf32>
    %185 = vector.extract_strided_slice %180 {offsets = [0, 96], sizes = [2, 32], strides = [1, 1]} : vector<2x128xf32> to vector<2x32xf32>
    %186 = arith.mulf %183, %168 : vector<2x32xf32>
    %187 = arith.mulf %182, %184 : vector<2x32xf32>
    %188 = arith.addf %186, %187 : vector<2x32xf32>
    %189 = math.tanh %188 : vector<2x32xf32>
    %190 = arith.mulf %185, %189 : vector<2x32xf32>
    %191 = arith.truncf %190 : vector<2x32xf32> to vector<2x32xbf16>
    %cst_61 = arith.constant dense<0.000000e+00> : vector<2x128xf32>
    %192 = tpu.matmul %191, %3, %cst_61 {dimension_numbers = #tpu.dot_dimension_numbers<[1], [0], [0], [1], [0, 0, 1, 1], [], []>} : vector<2x32xbf16>, vector<32x128xbf16>, vector<2x128xf32> -> vector<2x128xf32>
    %193 = arith.addf %46, %192 : vector<2x128xf32>
    %cst_62 = arith.constant 5.000000e-01 : f32
    %194 = vector.broadcast %cst_62 : f32 to vector<2x128xf32>
    %195 = arith.mulf %194, %193 : vector<2x128xf32>
    %196 = math.tanh %195 : vector<2x128xf32>
    %cst_63 = arith.constant 5.000000e-01 : f32
    %197 = vector.broadcast %cst_63 : f32 to vector<2x128xf32>
    %198 = arith.mulf %197, %196 : vector<2x128xf32>
    %cst_64 = arith.constant 5.000000e-01 : f32
    %199 = vector.broadcast %cst_64 : f32 to vector<2x128xf32>
    %200 = arith.addf %198, %199 : vector<2x128xf32>
    %201 = math.tanh %193 : vector<2x128xf32>
    %202 = vector.extract_strided_slice %200 {offsets = [0, 0], sizes = [2, 32], strides = [1, 1]} : vector<2x128xf32> to vector<2x32xf32>
    %203 = vector.extract_strided_slice %200 {offsets = [0, 32], sizes = [2, 32], strides = [1, 1]} : vector<2x128xf32> to vector<2x32xf32>
    %204 = vector.extract_strided_slice %201 {offsets = [0, 64], sizes = [2, 32], strides = [1, 1]} : vector<2x128xf32> to vector<2x32xf32>
    %205 = vector.extract_strided_slice %200 {offsets = [0, 96], sizes = [2, 32], strides = [1, 1]} : vector<2x128xf32> to vector<2x32xf32>
    %206 = arith.mulf %203, %188 : vector<2x32xf32>
    %207 = arith.mulf %202, %204 : vector<2x32xf32>
    %208 = arith.addf %206, %207 : vector<2x32xf32>
    %209 = math.tanh %208 : vector<2x32xf32>
    %210 = arith.mulf %205, %209 : vector<2x32xf32>
    %c0_65 = arith.constant 0 : index
    %c0_66 = arith.constant 0 : index
    %c0_67 = arith.constant 0 : index
    %211 = vector.load %arg3[%c0_65, %c0_66, %c0_67] : memref<2x2x32xf32, #tpu.memory_space<vmem>>, vector<1x2x32xf32>
    %212 = vector.shape_cast %211 : vector<1x2x32xf32> to vector<2x32xf32>
    %213 = vector.shape_cast %210 : vector<2x32xf32> to vector<1x2x32xf32>
    tpu.vector_store %arg3[%c0_65, %c0_66, %c0_67], %213 {strides = array<i32>} : memref<2x2x32xf32, #tpu.memory_space<vmem>>, vector<1x2x32xf32>,
    %c1_68 = arith.constant 1 : index
    %c0_69 = arith.constant 0 : index
    %c0_70 = arith.constant 0 : index
    %214 = vector.load %arg3[%c1_68, %c0_69, %c0_70] : memref<2x2x32xf32, #tpu.memory_space<vmem>>, vector<1x2x32xf32>
    %215 = vector.shape_cast %214 : vector<1x2x32xf32> to vector<2x32xf32>
    %216 = vector.shape_cast %208 : vector<2x32xf32> to vector<1x2x32xf32>
    tpu.vector_store %arg3[%c1_68, %c0_69, %c0_70], %216 {strides = array<i32>} : memref<2x2x32xf32, #tpu.memory_space<vmem>>, vector<1x2x32xf32>,
    return
  }
}

</mosaic_0001>

<llo_original>
// kernel: tpu_custom_call.1
$region0: #{tpu_custom_call.1}
  #allocation0 [shape = 'u32[]', space=smem, size = 0x4, offset = 0x4, fixed_abs, tag = 'smem constant byte address 0x4 - core index']
  #allocation1 [shape = 'u32[144,128]{1,0:T(1,128)}', space=vmem, size = 0x12000, scoped, tag = 'internal scratch']
  %s0 = inlined_call_operand.hbm [shape: f32[8,2,16], index: 0, kind: input, shape index: {}]
  %s1 = inlined_call_operand.hbm [shape: f32[49,128], index: 1, kind: input, shape index: {}]
  %s2 = inlined_call_operand.vmem [shape: f32[2,2,32], index: 2, kind: input, shape index: {}]
  %s3 = inlined_call_operand.hbm [shape: f32[2,2,32], index: 3, kind: output, shape index: {}]
  %s4 = sld [smem:[#allocation0]]
  $region30: #{tpu_custom_call.1} parent=0
    _
  %s6 = ssub.s32 1, %s4
  %s7 = scalar_select 0, %s6, %s4
  $region1: #{tpu_custom_call.1} parent=0
    #allocation2 [shape = 'u8[8192]{0}', space=vmem, size = 0x2000, scoped, tag = 'input window, operand 0, single buffered']
    #allocation3 [shape = 's32[1]{0}', space=sflag, size = 0x4, scoped, tag = 'scoped memory for tpu_custom_call.1']
    #allocation4 [shape = 's32[1]{0}', space=sflag, size = 0x4, scoped, tag = 'scoped memory for tpu_custom_call.1']
    #allocation5 [shape = 'u8[28672]{0}', space=vmem, size = 0x7000, scoped, tag = 'input window, operand 1, single buffered']
    #allocation6 [shape = 's32[1]{0}', space=sflag, size = 0x4, scoped, tag = 'scoped memory for tpu_custom_call.1']
    #allocation7 [shape = 'u8[2048]{0}', space=vmem, size = 0x800, scoped, tag = 'output window, operand 0, single buffered']
    %8 = vsyncpa [#allocation3], 0
    %9 = vsyncpa [#allocation6], 0
    %10 = vsyncpa [#allocation4], 0
    // Predicated region
    $region2: #{tpu_custom_call.1} parent=1 // pred_check
      _
    $region3: #{tpu_custom_call.1} parent=1 // pred_check_branch
      %12 = sbr.rel (0) target = $region5
    $region4: #{tpu_custom_call.1} parent=1 // pred_region
      %s14 = ssub.s32 256, 256
      %15 = vsyncadd [#allocation3], %s14
      %s16 = sshll.u32 [#allocation2], 4
      %s17 = int_to_ptr.vmem [resolvable:$true] %s16
      %22 = dma.hbm_to_vmem [thread:$0]  %s0, 256, %s17, [#allocation3], 32, 32, 2
    $region5: #{tpu_custom_call.1} parent=1 // pred_fallthru
      _
    // Predicated region
    $region6: #{tpu_custom_call.1} parent=1 // pred_check
      _
    $region7: #{tpu_custom_call.1} parent=1 // pred_check_branch
      %24 = sbr.rel (0) target = $region9
    $region8: #{tpu_custom_call.1} parent=1 // pred_region
      %s26 = ssub.s32 896, 896
      %27 = vsyncadd [#allocation6], %s26
      %s28 = sshll.u32 [#allocation5], 4
      %s29 = int_to_ptr.vmem [resolvable:$true] %s28
      %34 = dma.hbm_to_vmem [thread:$0]  %s1, 896, %s29, [#allocation6], 128, 128, 8
    $region9: #{tpu_custom_call.1} parent=1 // pred_fallthru
      _
    // Predicated region
    $region10: #{tpu_custom_call.1} parent=1 // pred_check
      _
    $region11: #{tpu_custom_call.1} parent=1 // pred_check_branch
      %36 = sbr.rel (0) target = $region13
    $region12: #{tpu_custom_call.1} parent=1 // pred_region
      _
    $region13: #{tpu_custom_call.1} parent=1 // pred_fallthru
      _
    // Predicated region
    $region14: #{tpu_custom_call.1} parent=1 // pred_check
      _
    $region15: #{tpu_custom_call.1} parent=1 // pred_check_branch
      %38 = sbr.rel (0) target = $region17
    $region16: #{tpu_custom_call.1} parent=1 // pred_region
      %39 = dma.done [#allocation3], 256
    $region17: #{tpu_custom_call.1} parent=1 // pred_fallthru
      _
    // Predicated region
    $region18: #{tpu_custom_call.1} parent=1 // pred_check
      _
    $region19: #{tpu_custom_call.1} parent=1 // pred_check_branch
      %41 = sbr.rel (0) target = $region21
    $region20: #{tpu_custom_call.1} parent=1 // pred_region
      %42 = dma.done [#allocation6], 896
    $region21: #{tpu_custom_call.1} parent=1 // pred_fallthru
      _
    %v44 = vld [vmem:[#allocation5] sm:$0xff]
    %v45 = vld [vmem:[#allocation5 + $0x8] sm:$0xff]
    %v46 = vpack.c.bf16 %v45, %v44
    %v47 = vld [vmem:[#allocation5 + $0x10] sm:$0xff]
    %v48 = vld [vmem:[#allocation5 + $0x18] sm:$0xff]
    %v49 = vld [vmem:[#allocation5 + $0x20] sm:$0xff]
    %v50 = vld [vmem:[#allocation5 + $0x28] sm:$0xff]
    %v51 = vpack.c.bf16 %v48, %v47
    %v52 = vpack.c.bf16 %v50, %v49
    %v53 = vld [vmem:[#allocation5 + $0x30] sm:$0x1]
    %v54 = vlaneseq
    %v55 = vshrl.u32 %v54, 7
    %v56 = vsub.s32 0, %v55
    %v57 = vrot.slane %v53, %v56
    %v58 = vld [vmem:[#allocation2] sm:$0x3]
    %v59 = vpack.c.bf16 %v58, %v58
    %vm60 = vcmask 130048
    %v62 = vsel %vm60, %v59, 0
    %64 = vmatprep.subr.bf16.mxu0 0
    %65 = vmatpush1.bf16.msra.mxu0 %v46
    %66 = vmatprep.subr.bf16.mxu0 0
    %67 = vmatpush1.bf16.msra.mxu0 0
    %68 = vmatprep.subr.bf16.mxu0 0
    %69 = vmatpush1.bf16.msra.mxu0 0
    %70 = vmatprep.subr.bf16.mxu0 0
    %71 = vmatpush1.bf16.msra.mxu0 0
    %72 = vmatprep.subr.bf16.mxu0 0
    %73 = vmatpush1.bf16.msra.mxu0 0
    %74 = vmatprep.subr.bf16.mxu0 0
    %75 = vmatpush1.bf16.msra.mxu0 0
    %76 = vmatprep.subr.bf16.mxu0 0
    %77 = vmatpush1.bf16.msra.mxu0 0
    %78 = vmatprep.subr.bf16.mxu0 0
    %79 = vmatpush1.bf16.msra.mxu0 0
    %80 = vmatprep.subr.bf16.mxu0 0
    %81 = vmatpush1.bf16.msra.mxu0 0
    %82 = vmatprep.subr.bf16.mxu0 0
    %83 = vmatpush1.bf16.msra.mxu0 0
    %84 = vmatprep.subr.bf16.mxu0 0
    %85 = vmatpush1.bf16.msra.mxu0 0
    %86 = vmatprep.subr.bf16.mxu0 0
    %87 = vmatpush1.bf16.msra.mxu0 0
    %88 = vmatprep.subr.bf16.mxu0 0
    %89 = vmatpush1.bf16.msra.mxu0 0
    %90 = vmatprep.subr.bf16.mxu0 0
    %91 = vmatpush1.bf16.msra.mxu0 0
    %92 = vmatprep.subr.bf16.mxu0 0
    %93 = vmatpush1.bf16.msra.mxu0 0
    %94 = vmatprep.subr.bf16.mxu0 0
    %95 = vmatpush1.bf16.msra.mxu0 0
    %96 = vmatprep.mubr.bf16.mxu0 0
    %97 = vmatmul.mubr.bf16.gmra.mrb[0].mxu0 %v62
    %v98 = vpop.f32.mrb[0].mxu0
    %v99 = vadd.f32 %v57, %v98
    %v100 = vpop.f32.mrb[0].mxu0
    %v101 = vpop.f32.mrb[0].mxu0
    %v102 = vpop.f32.mrb[0].mxu0
    %103 = vdwg.mxu0
    %s104 = scalar_lea.vmem [#allocation2], 2
    %v105 = vld [vmem:[%s104] sm:$0x3]
    %v106 = vpack.c.bf16 %v105, %v105
    %v108 = vsel %vm60, %v106, 0
    %110 = vmatprep.subr.bf16.mxu0 0
    %111 = vmatpush1.bf16.msra.mxu0 %v46
    %112 = vmatprep.subr.bf16.mxu0 0
    %113 = vmatpush1.bf16.msra.mxu0 0
    %114 = vmatprep.subr.bf16.mxu0 0
    %115 = vmatpush1.bf16.msra.mxu0 0
    %116 = vmatprep.subr.bf16.mxu0 0
    %117 = vmatpush1.bf16.msra.mxu0 0
    %118 = vmatprep.subr.bf16.mxu0 0
    %119 = vmatpush1.bf16.msra.mxu0 0
    %120 = vmatprep.subr.bf16.mxu0 0
    %121 = vmatpush1.bf16.msra.mxu0 0
    %122 = vmatprep.subr.bf16.mxu0 0
    %123 = vmatpush1.bf16.msra.mxu0 0
    %124 = vmatprep.subr.bf16.mxu0 0
    %125 = vmatpush1.bf16.msra.mxu0 0
    %126 = vmatprep.subr.bf16.mxu0 0
    %127 = vmatpush1.bf16.msra.mxu0 0
    %128 = vmatprep.subr.bf16.mxu0 0
    %129 = vmatpush1.bf16.msra.mxu0 0
    %130 = vmatprep.subr.bf16.mxu0 0
    %131 = vmatpush1.bf16.msra.mxu0 0
    %132 = vmatprep.subr.bf16.mxu0 0
    %133 = vmatpush1.bf16.msra.mxu0 0
    %134 = vmatprep.subr.bf16.mxu0 0
    %135 = vmatpush1.bf16.msra.mxu0 0
    %136 = vmatprep.subr.bf16.mxu0 0
    %137 = vmatpush1.bf16.msra.mxu0 0
    %138 = vmatprep.subr.bf16.mxu0 0
    %139 = vmatpush1.bf16.msra.mxu0 0
    %140 = vmatprep.subr.bf16.mxu0 0
    %141 = vmatpush1.bf16.msra.mxu0 0
    %142 = vmatprep.mubr.bf16.mxu0 0
    %143 = vmatmul.mubr.bf16.gmra.mrb[0].mxu0 %v108
    %v144 = vpop.f32.mrb[0].mxu0
    %v145 = vadd.f32 %v57, %v144
    %v146 = vpop.f32.mrb[0].mxu0
    %v147 = vpop.f32.mrb[0].mxu0
    %v148 = vpop.f32.mrb[0].mxu0
    %149 = vdwg.mxu0
    %s150 = scalar_lea.vmem [#allocation2], 4
    %v151 = vld [vmem:[%s150] sm:$0x3]
    %v152 = vpack.c.bf16 %v151, %v151
    %v154 = vsel %vm60, %v152, 0
    %156 = vmatprep.subr.bf16.mxu0 0
    %157 = vmatpush1.bf16.msra.mxu0 %v46
    %158 = vmatprep.subr.bf16.mxu0 0
    %159 = vmatpush1.bf16.msra.mxu0 0
    %160 = vmatprep.subr.bf16.mxu0 0
    %161 = vmatpush1.bf16.msra.mxu0 0
    %162 = vmatprep.subr.bf16.mxu0 0
    %163 = vmatpush1.bf16.msra.mxu0 0
    %164 = vmatprep.subr.bf16.mxu0 0
    %165 = vmatpush1.bf16.msra.mxu0 0
    %166 = vmatprep.subr.bf16.mxu0 0
    %167 = vmatpush1.bf16.msra.mxu0 0
    %168 = vmatprep.subr.bf16.mxu0 0
    %169 = vmatpush1.bf16.msra.mxu0 0
    %170 = vmatprep.subr.bf16.mxu0 0
    %171 = vmatpush1.bf16.msra.mxu0 0
    %172 = vmatprep.subr.bf16.mxu0 0
    %173 = vmatpush1.bf16.msra.mxu0 0
    %174 = vmatprep.subr.bf16.mxu0 0
    %175 = vmatpush1.bf16.msra.mxu0 0
    %176 = vmatprep.subr.bf16.mxu0 0
    %177 = vmatpush1.bf16.msra.mxu0 0
    %178 = vmatprep.subr.bf16.mxu0 0
    %179 = vmatpush1.bf16.msra.mxu0 0
    %180 = vmatprep.subr.bf16.mxu0 0
    %181 = vmatpush1.bf16.msra.mxu0 0
    %182 = vmatprep.subr.bf16.mxu0 0
    %183 = vmatpush1.bf16.msra.mxu0 0
    %184 = vmatprep.subr.bf16.mxu0 0
    %185 = vmatpush1.bf16.msra.mxu0 0
    %186 = vmatprep.subr.bf16.mxu0 0
    %187 = vmatpush1.bf16.msra.mxu0 0
    %188 = vmatprep.mubr.bf16.mxu0 0
    %189 = vmatmul.mubr.bf16.gmra.mrb[0].mxu0 %v154
    %v190 = vpop.f32.mrb[0].mxu0
    %v191 = vadd.f32 %v57, %v190
    %v192 = vpop.f32.mrb[0].mxu0
    %v193 = vpop.f32.mrb[0].mxu0
    %v194 = vpop.f32.mrb[0].mxu0
    %195 = vdwg.mxu0
    %s196 = scalar_lea.vmem [#allocation2], 6
    %v197 = vld [vmem:[%s196] sm:$0x3]
    %v198 = vpack.c.bf16 %v197, %v197
    %v200 = vsel %vm60, %v198, 0
    %202 = vmatprep.subr.bf16.mxu0 0
    %203 = vmatpush1.bf16.msra.mxu0 %v46
    %204 = vmatprep.subr.bf16.mxu0 0
    %205 = vmatpush1.bf16.msra.mxu0 0
    %206 = vmatprep.subr.bf16.mxu0 0
    %207 = vmatpush1.bf16.msra.mxu0 0
    %208 = vmatprep.subr.bf16.mxu0 0
    %209 = vmatpush1.bf16.msra.mxu0 0
    %210 = vmatprep.subr.bf16.mxu0 0
    %211 = vmatpush1.bf16.msra.mxu0 0
    %212 = vmatprep.subr.bf16.mxu0 0
    %213 = vmatpush1.bf16.msra.mxu0 0
    %214 = vmatprep.subr.bf16.mxu0 0
    %215 = vmatpush1.bf16.msra.mxu0 0
    %216 = vmatprep.subr.bf16.mxu0 0
    %217 = vmatpush1.bf16.msra.mxu0 0
    %218 = vmatprep.subr.bf16.mxu0 0
    %219 = vmatpush1.bf16.msra.mxu0 0
    %220 = vmatprep.subr.bf16.mxu0 0
    %221 = vmatpush1.bf16.msra.mxu0 0
    %222 = vmatprep.subr.bf16.mxu0 0
    %223 = vmatpush1.bf16.msra.mxu0 0
    %224 = vmatprep.subr.bf16.mxu0 0
    %225 = vmatpush1.bf16.msra.mxu0 0
    %226 = vmatprep.subr.bf16.mxu0 0
    %227 = vmatpush1.bf16.msra.mxu0 0
    %228 = vmatprep.subr.bf16.mxu0 0
    %229 = vmatpush1.bf16.msra.mxu0 0
    %230 = vmatprep.subr.bf16.mxu0 0
    %231 = vmatpush1.bf16.msra.mxu0 0
    %232 = vmatprep.subr.bf16.mxu0 0
    %233 = vmatpush1.bf16.msra.mxu0 0
    %234 = vmatprep.mubr.bf16.mxu0 0
    %235 = vmatmul.mubr.bf16.gmra.mrb[0].mxu0 %v200
    %v236 = vpop.f32.mrb[0].mxu0
    %v237 = vadd.f32 %v57, %v236
    %v238 = vpop.f32.mrb[0].mxu0
    %v239 = vpop.f32.mrb[0].mxu0
    %v240 = vpop.f32.mrb[0].mxu0
    %241 = vdwg.mxu0
    %s242 = scalar_lea.vmem [#allocation2], 8
    %v243 = vld [vmem:[%s242] sm:$0x3]
    %v244 = vpack.c.bf16 %v243, %v243
    %v246 = vsel %vm60, %v244, 0
    %248 = vmatprep.subr.bf16.mxu0 0
    %249 = vmatpush1.bf16.msra.mxu0 %v46
    %250 = vmatprep.subr.bf16.mxu0 0
    %251 = vmatpush1.bf16.msra.mxu0 0
    %252 = vmatprep.subr.bf16.mxu0 0
    %253 = vmatpush1.bf16.msra.mxu0 0
    %254 = vmatprep.subr.bf16.mxu0 0
    %255 = vmatpush1.bf16.msra.mxu0 0
    %256 = vmatprep.subr.bf16.mxu0 0
    %257 = vmatpush1.bf16.msra.mxu0 0
    %258 = vmatprep.subr.bf16.mxu0 0
    %259 = vmatpush1.bf16.msra.mxu0 0
    %260 = vmatprep.subr.bf16.mxu0 0
    %261 = vmatpush1.bf16.msra.mxu0 0
    %262 = vmatprep.subr.bf16.mxu0 0
    %263 = vmatpush1.bf16.msra.mxu0 0
    %264 = vmatprep.subr.bf16.mxu0 0
    %265 = vmatpush1.bf16.msra.mxu0 0
    %266 = vmatprep.subr.bf16.mxu0 0
    %267 = vmatpush1.bf16.msra.mxu0 0
    %268 = vmatprep.subr.bf16.mxu0 0
    %269 = vmatpush1.bf16.msra.mxu0 0
    %270 = vmatprep.subr.bf16.mxu0 0
    %271 = vmatpush1.bf16.msra.mxu0 0
    %272 = vmatprep.subr.bf16.mxu0 0
    %273 = vmatpush1.bf16.msra.mxu0 0
    %274 = vmatprep.subr.bf16.mxu0 0
    %275 = vmatpush1.bf16.msra.mxu0 0
    %276 = vmatprep.subr.bf16.mxu0 0
    %277 = vmatpush1.bf16.msra.mxu0 0
    %278 = vmatprep.subr.bf16.mxu0 0
    %279 = vmatpush1.bf16.msra.mxu0 0
    %280 = vmatprep.mubr.bf16.mxu0 0
    %281 = vmatmul.mubr.bf16.gmra.mrb[0].mxu0 %v246
    %v282 = vpop.f32.mrb[0].mxu0
    %v283 = vadd.f32 %v57, %v282
    %v284 = vpop.f32.mrb[0].mxu0
    %v285 = vpop.f32.mrb[0].mxu0
    %v286 = vpop.f32.mrb[0].mxu0
    %287 = vdwg.mxu0
    %s288 = scalar_lea.vmem [#allocation2], 10
    %v289 = vld [vmem:[%s288] sm:$0x3]
    %v290 = vpack.c.bf16 %v289, %v289
    %v292 = vsel %vm60, %v290, 0
    %294 = vmatprep.subr.bf16.mxu0 0
    %295 = vmatpush1.bf16.msra.mxu0 %v46
    %296 = vmatprep.subr.bf16.mxu0 0
    %297 = vmatpush1.bf16.msra.mxu0 0
    %298 = vmatprep.subr.bf16.mxu0 0
    %299 = vmatpush1.bf16.msra.mxu0 0
    %300 = vmatprep.subr.bf16.mxu0 0
    %301 = vmatpush1.bf16.msra.mxu0 0
    %302 = vmatprep.subr.bf16.mxu0 0
    %303 = vmatpush1.bf16.msra.mxu0 0
    %304 = vmatprep.subr.bf16.mxu0 0
    %305 = vmatpush1.bf16.msra.mxu0 0
    %306 = vmatprep.subr.bf16.mxu0 0
    %307 = vmatpush1.bf16.msra.mxu0 0
    %308 = vmatprep.subr.bf16.mxu0 0
    %309 = vmatpush1.bf16.msra.mxu0 0
    %310 = vmatprep.subr.bf16.mxu0 0
    %311 = vmatpush1.bf16.msra.mxu0 0
    %312 = vmatprep.subr.bf16.mxu0 0
    %313 = vmatpush1.bf16.msra.mxu0 0
    %314 = vmatprep.subr.bf16.mxu0 0
    %315 = vmatpush1.bf16.msra.mxu0 0
    %316 = vmatprep.subr.bf16.mxu0 0
    %317 = vmatpush1.bf16.msra.mxu0 0
    %318 = vmatprep.subr.bf16.mxu0 0
    %319 = vmatpush1.bf16.msra.mxu0 0
    %320 = vmatprep.subr.bf16.mxu0 0
    %321 = vmatpush1.bf16.msra.mxu0 0
    %322 = vmatprep.subr.bf16.mxu0 0
    %323 = vmatpush1.bf16.msra.mxu0 0
    %324 = vmatprep.subr.bf16.mxu0 0
    %325 = vmatpush1.bf16.msra.mxu0 0
    %326 = vmatprep.mubr.bf16.mxu0 0
    %327 = vmatmul.mubr.bf16.gmra.mrb[0].mxu0 %v292
    %v328 = vpop.f32.mrb[0].mxu0
    %v329 = vadd.f32 %v57, %v328
    %v330 = vpop.f32.mrb[0].mxu0
    %v331 = vpop.f32.mrb[0].mxu0
    %v332 = vpop.f32.mrb[0].mxu0
    %333 = vdwg.mxu0
    %s334 = scalar_lea.vmem [#allocation2], 12
    %v335 = vld [vmem:[%s334] sm:$0x3]
    %v336 = vpack.c.bf16 %v335, %v335
    %v338 = vsel %vm60, %v336, 0
    %340 = vmatprep.subr.bf16.mxu0 0
    %341 = vmatpush1.bf16.msra.mxu0 %v46
    %342 = vmatprep.subr.bf16.mxu0 0
    %343 = vmatpush1.bf16.msra.mxu0 0
    %344 = vmatprep.subr.bf16.mxu0 0
    %345 = vmatpush1.bf16.msra.mxu0 0
    %346 = vmatprep.subr.bf16.mxu0 0
    %347 = vmatpush1.bf16.msra.mxu0 0
    %348 = vmatprep.subr.bf16.mxu0 0
    %349 = vmatpush1.bf16.msra.mxu0 0
    %350 = vmatprep.subr.bf16.mxu0 0
    %351 = vmatpush1.bf16.msra.mxu0 0
    %352 = vmatprep.subr.bf16.mxu0 0
    %353 = vmatpush1.bf16.msra.mxu0 0
    %354 = vmatprep.subr.bf16.mxu0 0
    %355 = vmatpush1.bf16.msra.mxu0 0
    %356 = vmatprep.subr.bf16.mxu0 0
    %357 = vmatpush1.bf16.msra.mxu0 0
    %358 = vmatprep.subr.bf16.mxu0 0
    %359 = vmatpush1.bf16.msra.mxu0 0
    %360 = vmatprep.subr.bf16.mxu0 0
    %361 = vmatpush1.bf16.msra.mxu0 0
    %362 = vmatprep.subr.bf16.mxu0 0
    %363 = vmatpush1.bf16.msra.mxu0 0
    %364 = vmatprep.subr.bf16.mxu0 0
    %365 = vmatpush1.bf16.msra.mxu0 0
    %366 = vmatprep.subr.bf16.mxu0 0
    %367 = vmatpush1.bf16.msra.mxu0 0
    %368 = vmatprep.subr.bf16.mxu0 0
    %369 = vmatpush1.bf16.msra.mxu0 0
    %370 = vmatprep.subr.bf16.mxu0 0
    %371 = vmatpush1.bf16.msra.mxu0 0
    %372 = vmatprep.mubr.bf16.mxu0 0
    %373 = vmatmul.mubr.bf16.gmra.mrb[0].mxu0 %v338
    %v374 = vpop.f32.mrb[0].mxu0
    %v375 = vadd.f32 %v57, %v374
    %v376 = vpop.f32.mrb[0].mxu0
    %v377 = vpop.f32.mrb[0].mxu0
    %v378 = vpop.f32.mrb[0].mxu0
    %379 = vdwg.mxu0
    %s380 = scalar_lea.vmem [#allocation2], 14
    %v381 = vld [vmem:[%s380] sm:$0x3]
    %v382 = vpack.c.bf16 %v381, %v381
    %v384 = vsel %vm60, %v382, 0
    %386 = vmatprep.subr.bf16.mxu0 0
    %387 = vmatpush1.bf16.msra.mxu0 %v46
    %388 = vmatprep.subr.bf16.mxu0 0
    %389 = vmatpush1.bf16.msra.mxu0 0
    %390 = vmatprep.subr.bf16.mxu0 0
    %391 = vmatpush1.bf16.msra.mxu0 0
    %392 = vmatprep.subr.bf16.mxu0 0
    %393 = vmatpush1.bf16.msra.mxu0 0
    %394 = vmatprep.subr.bf16.mxu0 0
    %395 = vmatpush1.bf16.msra.mxu0 0
    %396 = vmatprep.subr.bf16.mxu0 0
    %397 = vmatpush1.bf16.msra.mxu0 0
    %398 = vmatprep.subr.bf16.mxu0 0
    %399 = vmatpush1.bf16.msra.mxu0 0
    %400 = vmatprep.subr.bf16.mxu0 0
    %401 = vmatpush1.bf16.msra.mxu0 0
    %402 = vmatprep.subr.bf16.mxu0 0
    %403 = vmatpush1.bf16.msra.mxu0 0
    %404 = vmatprep.subr.bf16.mxu0 0
    %405 = vmatpush1.bf16.msra.mxu0 0
    %406 = vmatprep.subr.bf16.mxu0 0
    %407 = vmatpush1.bf16.msra.mxu0 0
    %408 = vmatprep.subr.bf16.mxu0 0
    %409 = vmatpush1.bf16.msra.mxu0 0
    %410 = vmatprep.subr.bf16.mxu0 0
    %411 = vmatpush1.bf16.msra.mxu0 0
    %412 = vmatprep.subr.bf16.mxu0 0
    %413 = vmatpush1.bf16.msra.mxu0 0
    %414 = vmatprep.subr.bf16.mxu0 0
    %415 = vmatpush1.bf16.msra.mxu0 0
    %416 = vmatprep.subr.bf16.mxu0 0
    %417 = vmatpush1.bf16.msra.mxu0 0
    %418 = vmatprep.mubr.bf16.mxu0 0
    %419 = vmatmul.mubr.bf16.gmra.mrb[0].mxu0 %v384
    %v420 = vpop.f32.mrb[0].mxu0
    %v421 = vadd.f32 %v57, %v420
    %v422 = vpop.f32.mrb[0].mxu0
    %v423 = vpop.f32.mrb[0].mxu0
    %v424 = vpop.f32.mrb[0].mxu0
    %425 = vdwg.mxu0
    %v426 = vld [vmem:[%s2] sm:$0x3]
    %s427 = scalar_lea.vmem %s2, 2
    %v428 = vld [vmem:[%s427] sm:$0x3]
    %v429 = vpack.c.bf16 %v426, %v426
    %vm430 = vcmask 261120
    %v432 = vsel %vm430, %v429, 0
    %434 = vmatprep.subr.bf16.mxu0 0
    %435 = vmatpush1.bf16.msra.mxu0 %v51
    %436 = vmatprep.subr.bf16.mxu0 0
    %437 = vmatpush1.bf16.msra.mxu0 %v52
    %438 = vmatprep.subr.bf16.mxu0 0
    %439 = vmatpush1.bf16.msra.mxu0 0
    %440 = vmatprep.subr.bf16.mxu0 0
    %441 = vmatpush1.bf16.msra.mxu0 0
    %442 = vmatprep.subr.bf16.mxu0 0
    %443 = vmatpush1.bf16.msra.mxu0 0
    %444 = vmatprep.subr.bf16.mxu0 0
    %445 = vmatpush1.bf16.msra.mxu0 0
    %446 = vmatprep.subr.bf16.mxu0 0
    %447 = vmatpush1.bf16.msra.mxu0 0
    %448 = vmatprep.subr.bf16.mxu0 0
    %449 = vmatpush1.bf16.msra.mxu0 0
    %450 = vmatprep.subr.bf16.mxu0 0
    %451 = vmatpush1.bf16.msra.mxu0 0
    %452 = vmatprep.subr.bf16.mxu0 0
    %453 = vmatpush1.bf16.msra.mxu0 0
    %454 = vmatprep.subr.bf16.mxu0 0
    %455 = vmatpush1.bf16.msra.mxu0 0
    %456 = vmatprep.subr.bf16.mxu0 0
    %457 = vmatpush1.bf16.msra.mxu0 0
    %458 = vmatprep.subr.bf16.mxu0 0
    %459 = vmatpush1.bf16.msra.mxu0 0
    %460 = vmatprep.subr.bf16.mxu0 0
    %461 = vmatpush1.bf16.msra.mxu0 0
    %462 = vmatprep.subr.bf16.mxu0 0
    %463 = vmatpush1.bf16.msra.mxu0 0
    %464 = vmatprep.subr.bf16.mxu0 0
    %465 = vmatpush1.bf16.msra.mxu0 0
    %466 = vmatprep.mubr.bf16.mxu0 0
    %467 = vmatmul.mubr.bf16.gmra.mrb[0].mxu0 %v432
    %v468 = vpop.f32.mrb[0].mxu0
    %v469 = vadd.f32 0.0, %v468
    %v470 = vpop.f32.mrb[0].mxu0
    %v471 = vpop.f32.mrb[0].mxu0
    %v472 = vpop.f32.mrb[0].mxu0
    %473 = vdwg.mxu0
    %v474 = vadd.f32 %v99, %v469
    %v475 = vmul.f32 %v474, 0.5
    %v476 = vtanh.pop %v475
    %v477 = vmul.f32 %v476, 0.5
    %v478 = vadd.f32 %v477, 0.5
    %v479 = vtanh.pop %v474
    %481 = vrot.lane.b32.xlu0 %v428, 32
    %v482 = vpop.permute.xlu0 %481
    %v484 = vmul.f32 %v478, %v482
    %486 = vrot.lane.b32.xlu0 %v479, 64
    %v487 = vpop.permute.xlu0 %486
    %v489 = vmul.f32 %v478, %v487
    %491 = vrot.lane.b32.xlu0 %v489, 32
    %v492 = vpop.permute.xlu0 %491
    %v494 = vadd.f32 %v484, %v492
    %v495 = vtanh.pop %v494
    %497 = vrot.lane.b32.xlu0 %v495, 64
    %v498 = vpop.permute.xlu0 %497
    %v500 = vmul.f32 %v478, %v498
    %v501 = vpack.c.bf16 %v500, %v500
    %503 = vrot.lane.b32.xlu0 %v501, 32
    %v504 = vpop.permute.xlu0 %503
    %v506 = vsel %vm430, %v504, 0
    %508 = vmatprep.subr.bf16.mxu0 0
    %509 = vmatpush1.bf16.msra.mxu0 %v51
    %510 = vmatprep.subr.bf16.mxu0 0
    %511 = vmatpush1.bf16.msra.mxu0 %v52
    %512 = vmatprep.subr.bf16.mxu0 0
    %513 = vmatpush1.bf16.msra.mxu0 0
    %514 = vmatprep.subr.bf16.mxu0 0
    %515 = vmatpush1.bf16.msra.mxu0 0
    %516 = vmatprep.subr.bf16.mxu0 0
    %517 = vmatpush1.bf16.msra.mxu0 0
    %518 = vmatprep.subr.bf16.mxu0 0
    %519 = vmatpush1.bf16.msra.mxu0 0
    %520 = vmatprep.subr.bf16.mxu0 0
    %521 = vmatpush1.bf16.msra.mxu0 0
    %522 = vmatprep.subr.bf16.mxu0 0
    %523 = vmatpush1.bf16.msra.mxu0 0
    %524 = vmatprep.subr.bf16.mxu0 0
    %525 = vmatpush1.bf16.msra.mxu0 0
    %526 = vmatprep.subr.bf16.mxu0 0
    %527 = vmatpush1.bf16.msra.mxu0 0
    %528 = vmatprep.subr.bf16.mxu0 0
    %529 = vmatpush1.bf16.msra.mxu0 0
    %530 = vmatprep.subr.bf16.mxu0 0
    %531 = vmatpush1.bf16.msra.mxu0 0
    %532 = vmatprep.subr.bf16.mxu0 0
    %533 = vmatpush1.bf16.msra.mxu0 0
    %534 = vmatprep.subr.bf16.mxu0 0
    %535 = vmatpush1.bf16.msra.mxu0 0
    %536 = vmatprep.subr.bf16.mxu0 0
    %537 = vmatpush1.bf16.msra.mxu0 0
    %538 = vmatprep.subr.bf16.mxu0 0
    %539 = vmatpush1.bf16.msra.mxu0 0
    %540 = vmatprep.mubr.bf16.mxu0 0
    %541 = vmatmul.mubr.bf16.gmra.mrb[0].mxu0 %v506
    %v542 = vpop.f32.mrb[0].mxu0
    %v543 = vadd.f32 0.0, %v542
    %v544 = vpop.f32.mrb[0].mxu0
    %v545 = vpop.f32.mrb[0].mxu0
    %v546 = vpop.f32.mrb[0].mxu0
    %547 = vdwg.mxu0
    %v548 = vadd.f32 %v145, %v543
    %v549 = vmul.f32 %v548, 0.5
    %v550 = vtanh.pop %v549
    %v551 = vmul.f32 %v550, 0.5
    %v552 = vadd.f32 %v551, 0.5
    %v553 = vtanh.pop %v548
    %v554 = vmul.f32 %v552, %v494
    %556 = vrot.lane.b32.xlu0 %v553, 64
    %v557 = vpop.permute.xlu0 %556
    %v559 = vmul.f32 %v552, %v557
    %561 = vrot.lane.b32.xlu0 %v559, 32
    %v562 = vpop.permute.xlu0 %561
    %v564 = vadd.f32 %v554, %v562
    %v565 = vtanh.pop %v564
    %567 = vrot.lane.b32.xlu0 %v565, 64
    %v568 = vpop.permute.xlu0 %567
    %v570 = vmul.f32 %v552, %v568
    %v571 = vpack.c.bf16 %v570, %v570
    %573 = vrot.lane.b32.xlu0 %v571, 32
    %v574 = vpop.permute.xlu0 %573
    %v576 = vsel %vm430, %v574, 0
    %578 = vmatprep.subr.bf16.mxu0 0
    %579 = vmatpush1.bf16.msra.mxu0 %v51
    %580 = vmatprep.subr.bf16.mxu0 0
    %581 = vmatpush1.bf16.msra.mxu0 %v52
    %582 = vmatprep.subr.bf16.mxu0 0
    %583 = vmatpush1.bf16.msra.mxu0 0
    %584 = vmatprep.subr.bf16.mxu0 0
    %585 = vmatpush1.bf16.msra.mxu0 0
    %586 = vmatprep.subr.bf16.mxu0 0
    %587 = vmatpush1.bf16.msra.mxu0 0
    %588 = vmatprep.subr.bf16.mxu0 0
    %589 = vmatpush1.bf16.msra.mxu0 0
    %590 = vmatprep.subr.bf16.mxu0 0
    %591 = vmatpush1.bf16.msra.mxu0 0
    %592 = vmatprep.subr.bf16.mxu0 0
    %593 = vmatpush1.bf16.msra.mxu0 0
    %594 = vmatprep.subr.bf16.mxu0 0
    %595 = vmatpush1.bf16.msra.mxu0 0
    %596 = vmatprep.subr.bf16.mxu0 0
    %597 = vmatpush1.bf16.msra.mxu0 0
    %598 = vmatprep.subr.bf16.mxu0 0
    %599 = vmatpush1.bf16.msra.mxu0 0
    %600 = vmatprep.subr.bf16.mxu0 0
    %601 = vmatpush1.bf16.msra.mxu0 0
    %602 = vmatprep.subr.bf16.mxu0 0
    %603 = vmatpush1.bf16.msra.mxu0 0
    %604 = vmatprep.subr.bf16.mxu0 0
    %605 = vmatpush1.bf16.msra.mxu0 0
    %606 = vmatprep.subr.bf16.mxu0 0
    %607 = vmatpush1.bf16.msra.mxu0 0
    %608 = vmatprep.subr.bf16.mxu0 0
    %609 = vmatpush1.bf16.msra.mxu0 0
    %610 = vmatprep.mubr.bf16.mxu0 0
    %611 = vmatmul.mubr.bf16.gmra.mrb[0].mxu0 %v576
    %v612 = vpop.f32.mrb[0].mxu0
    %v613 = vadd.f32 0.0, %v612
    %v614 = vpop.f32.mrb[0].mxu0
    %v615 = vpop.f32.mrb[0].mxu0
    %v616 = vpop.f32.mrb[0].mxu0
    %617 = vdwg.mxu0
    %v618 = vadd.f32 %v191, %v613
    %v619 = vmul.f32 %v618, 0.5
    %v620 = vtanh.pop %v619
    %v621 = vmul.f32 %v620, 0.5
    %v622 = vadd.f32 %v621, 0.5
    %v623 = vtanh.pop %v618
    %v624 = vmul.f32 %v622, %v564
    %626 = vrot.lane.b32.xlu0 %v623, 64
    %v627 = vpop.permute.xlu0 %626
    %v629 = vmul.f32 %v622, %v627
    %631 = vrot.lane.b32.xlu0 %v629, 32
    %v632 = vpop.permute.xlu0 %631
    %v634 = vadd.f32 %v624, %v632
    %v635 = vtanh.pop %v634
    %637 = vrot.lane.b32.xlu0 %v635, 64
    %v638 = vpop.permute.xlu0 %637
    %v640 = vmul.f32 %v622, %v638
    %v641 = vpack.c.bf16 %v640, %v640
    %643 = vrot.lane.b32.xlu0 %v641, 32
    %v644 = vpop.permute.xlu0 %643
    %v646 = vsel %vm430, %v644, 0
    %648 = vmatprep.subr.bf16.mxu0 0
    %649 = vmatpush1.bf16.msra.mxu0 %v51
    %650 = vmatprep.subr.bf16.mxu0 0
    %651 = vmatpush1.bf16.msra.mxu0 %v52
    %652 = vmatprep.subr.bf16.mxu0 0
    %653 = vmatpush1.bf16.msra.mxu0 0
    %654 = vmatprep.subr.bf16.mxu0 0
    %655 = vmatpush1.bf16.msra.mxu0 0
    %656 = vmatprep.subr.bf16.mxu0 0
    %657 = vmatpush1.bf16.msra.mxu0 0
    %658 = vmatprep.subr.bf16.mxu0 0
    %659 = vmatpush1.bf16.msra.mxu0 0
    %660 = vmatprep.subr.bf16.mxu0 0
    %661 = vmatpush1.bf16.msra.mxu0 0
    %662 = vmatprep.subr.bf16.mxu0 0
    %663 = vmatpush1.bf16.msra.mxu0 0
    %664 = vmatprep.subr.bf16.mxu0 0
    %665 = vmatpush1.bf16.msra.mxu0 0
    %666 = vmatprep.subr.bf16.mxu0 0
    %667 = vmatpush1.bf16.msra.mxu0 0
    %668 = vmatprep.subr.bf16.mxu0 0
    %669 = vmatpush1.bf16.msra.mxu0 0
    %670 = vmatprep.subr.bf16.mxu0 0
    %671 = vmatpush1.bf16.msra.mxu0 0
    %672 = vmatprep.subr.bf16.mxu0 0
    %673 = vmatpush1.bf16.msra.mxu0 0
    %674 = vmatprep.subr.bf16.mxu0 0
    %675 = vmatpush1.bf16.msra.mxu0 0
    %676 = vmatprep.subr.bf16.mxu0 0
    %677 = vmatpush1.bf16.msra.mxu0 0
    %678 = vmatprep.subr.bf16.mxu0 0
    %679 = vmatpush1.bf16.msra.mxu0 0
    %680 = vmatprep.mubr.bf16.mxu0 0
    %681 = vmatmul.mubr.bf16.gmra.mrb[0].mxu0 %v646
    %v682 = vpop.f32.mrb[0].mxu0
    %v683 = vadd.f32 0.0, %v682
    %v684 = vpop.f32.mrb[0].mxu0
    %v685 = vpop.f32.mrb[0].mxu0
    %v686 = vpop.f32.mrb[0].mxu0
    %687 = vdwg.mxu0
    %v688 = vadd.f32 %v237, %v683
    %v689 = vmul.f32 %v688, 0.5
    %v690 = vtanh.pop %v689
    %v691 = vmul.f32 %v690, 0.5
    %v692 = vadd.f32 %v691, 0.5
    %v693 = vtanh.pop %v688
    %v694 = vmul.f32 %v692, %v634
    %696 = vrot.lane.b32.xlu0 %v693, 64
    %v697 = vpop.permute.xlu0 %696
    %v699 = vmul.f32 %v692, %v697
    %701 = vrot.lane.b32.xlu0 %v699, 32
    %v702 = vpop.permute.xlu0 %701
    %v704 = vadd.f32 %v694, %v702
    %v705 = vtanh.pop %v704
    %707 = vrot.lane.b32.xlu0 %v705, 64
    %v708 = vpop.permute.xlu0 %707
    %v710 = vmul.f32 %v692, %v708
    %v711 = vpack.c.bf16 %v710, %v710
    %713 = vrot.lane.b32.xlu0 %v711, 32
    %v714 = vpop.permute.xlu0 %713
    %v716 = vsel %vm430, %v714, 0
    %718 = vmatprep.subr.bf16.mxu0 0
    %719 = vmatpush1.bf16.msra.mxu0 %v51
    %720 = vmatprep.subr.bf16.mxu0 0
    %721 = vmatpush1.bf16.msra.mxu0 %v52
    %722 = vmatprep.subr.bf16.mxu0 0
    %723 = vmatpush1.bf16.msra.mxu0 0
    %724 = vmatprep.subr.bf16.mxu0 0
    %725 = vmatpush1.bf16.msra.mxu0 0
    %726 = vmatprep.subr.bf16.mxu0 0
    %727 = vmatpush1.bf16.msra.mxu0 0
    %728 = vmatprep.subr.bf16.mxu0 0
    %729 = vmatpush1.bf16.msra.mxu0 0
    %730 = vmatprep.subr.bf16.mxu0 0
    %731 = vmatpush1.bf16.msra.mxu0 0
    %732 = vmatprep.subr.bf16.mxu0 0
    %733 = vmatpush1.bf16.msra.mxu0 0
    %734 = vmatprep.subr.bf16.mxu0 0
    %735 = vmatpush1.bf16.msra.mxu0 0
    %736 = vmatprep.subr.bf16.mxu0 0
    %737 = vmatpush1.bf16.msra.mxu0 0
    %738 = vmatprep.subr.bf16.mxu0 0
    %739 = vmatpush1.bf16.msra.mxu0 0
    %740 = vmatprep.subr.bf16.mxu0 0
    %741 = vmatpush1.bf16.msra.mxu0 0
    %742 = vmatprep.subr.bf16.mxu0 0
    %743 = vmatpush1.bf16.msra.mxu0 0
    %744 = vmatprep.subr.bf16.mxu0 0
    %745 = vmatpush1.bf16.msra.mxu0 0
    %746 = vmatprep.subr.bf16.mxu0 0
    %747 = vmatpush1.bf16.msra.mxu0 0
    %748 = vmatprep.subr.bf16.mxu0 0
    %749 = vmatpush1.bf16.msra.mxu0 0
    %750 = vmatprep.mubr.bf16.mxu0 0
    %751 = vmatmul.mubr.bf16.gmra.mrb[0].mxu0 %v716
    %v752 = vpop.f32.mrb[0].mxu0
    %v753 = vadd.f32 0.0, %v752
    %v754 = vpop.f32.mrb[0].mxu0
    %v755 = vpop.f32.mrb[0].mxu0
    %v756 = vpop.f32.mrb[0].mxu0
    %757 = vdwg.mxu0
    %v758 = vadd.f32 %v283, %v753
    %v759 = vmul.f32 %v758, 0.5
    %v760 = vtanh.pop %v759
    %v761 = vmul.f32 %v760, 0.5
    %v762 = vadd.f32 %v761, 0.5
    %v763 = vtanh.pop %v758
    %v764 = vmul.f32 %v762, %v704
    %766 = vrot.lane.b32.xlu0 %v763, 64
    %v767 = vpop.permute.xlu0 %766
    %v769 = vmul.f32 %v762, %v767
    %771 = vrot.lane.b32.xlu0 %v769, 32
    %v772 = vpop.permute.xlu0 %771
    %v774 = vadd.f32 %v764, %v772
    %v775 = vtanh.pop %v774
    %777 = vrot.lane.b32.xlu0 %v775, 64
    %v778 = vpop.permute.xlu0 %777
    %v780 = vmul.f32 %v762, %v778
    %v781 = vpack.c.bf16 %v780, %v780
    %783 = vrot.lane.b32.xlu0 %v781, 32
    %v784 = vpop.permute.xlu0 %783
    %v786 = vsel %vm430, %v784, 0
    %788 = vmatprep.subr.bf16.mxu0 0
    %789 = vmatpush1.bf16.msra.mxu0 %v51
    %790 = vmatprep.subr.bf16.mxu0 0
    %791 = vmatpush1.bf16.msra.mxu0 %v52
    %792 = vmatprep.subr.bf16.mxu0 0
    %793 = vmatpush1.bf16.msra.mxu0 0
    %794 = vmatprep.subr.bf16.mxu0 0
    %795 = vmatpush1.bf16.msra.mxu0 0
    %796 = vmatprep.subr.bf16.mxu0 0
    %797 = vmatpush1.bf16.msra.mxu0 0
    %798 = vmatprep.subr.bf16.mxu0 0
    %799 = vmatpush1.bf16.msra.mxu0 0
    %800 = vmatprep.subr.bf16.mxu0 0
    %801 = vmatpush1.bf16.msra.mxu0 0
    %802 = vmatprep.subr.bf16.mxu0 0
    %803 = vmatpush1.bf16.msra.mxu0 0
    %804 = vmatprep.subr.bf16.mxu0 0
    %805 = vmatpush1.bf16.msra.mxu0 0
    %806 = vmatprep.subr.bf16.mxu0 0
    %807 = vmatpush1.bf16.msra.mxu0 0
    %808 = vmatprep.subr.bf16.mxu0 0
    %809 = vmatpush1.bf16.msra.mxu0 0
    %810 = vmatprep.subr.bf16.mxu0 0
    %811 = vmatpush1.bf16.msra.mxu0 0
    %812 = vmatprep.subr.bf16.mxu0 0
    %813 = vmatpush1.bf16.msra.mxu0 0
    %814 = vmatprep.subr.bf16.mxu0 0
    %815 = vmatpush1.bf16.msra.mxu0 0
    %816 = vmatprep.subr.bf16.mxu0 0
    %817 = vmatpush1.bf16.msra.mxu0 0
    %818 = vmatprep.subr.bf16.mxu0 0
    %819 = vmatpush1.bf16.msra.mxu0 0
    %820 = vmatprep.mubr.bf16.mxu0 0
    %821 = vmatmul.mubr.bf16.gmra.mrb[0].mxu0 %v786
    %v822 = vpop.f32.mrb[0].mxu0
    %v823 = vadd.f32 0.0, %v822
    %v824 = vpop.f32.mrb[0].mxu0
    %v825 = vpop.f32.mrb[0].mxu0
    %v826 = vpop.f32.mrb[0].mxu0
    %827 = vdwg.mxu0
    %v828 = vadd.f32 %v329, %v823
    %v829 = vmul.f32 %v828, 0.5
    %v830 = vtanh.pop %v829
    %v831 = vmul.f32 %v830, 0.5
    %v832 = vadd.f32 %v831, 0.5
    %v833 = vtanh.pop %v828
    %v834 = vmul.f32 %v832, %v774
    %836 = vrot.lane.b32.xlu0 %v833, 64
    %v837 = vpop.permute.xlu0 %836
    %v839 = vmul.f32 %v832, %v837
    %841 = vrot.lane.b32.xlu0 %v839, 32
    %v842 = vpop.permute.xlu0 %841
    %v844 = vadd.f32 %v834, %v842
    %v845 = vtanh.pop %v844
    %847 = vrot.lane.b32.xlu0 %v845, 64
    %v848 = vpop.permute.xlu0 %847
    %v850 = vmul.f32 %v832, %v848
    %v851 = vpack.c.bf16 %v850, %v850
    %853 = vrot.lane.b32.xlu0 %v851, 32
    %v854 = vpop.permute.xlu0 %853
    %v856 = vsel %vm430, %v854, 0
    %858 = vmatprep.subr.bf16.mxu0 0
    %859 = vmatpush1.bf16.msra.mxu0 %v51
    %860 = vmatprep.subr.bf16.mxu0 0
    %861 = vmatpush1.bf16.msra.mxu0 %v52
    %862 = vmatprep.subr.bf16.mxu0 0
    %863 = vmatpush1.bf16.msra.mxu0 0
    %864 = vmatprep.subr.bf16.mxu0 0
    %865 = vmatpush1.bf16.msra.mxu0 0
    %866 = vmatprep.subr.bf16.mxu0 0
    %867 = vmatpush1.bf16.msra.mxu0 0
    %868 = vmatprep.subr.bf16.mxu0 0
    %869 = vmatpush1.bf16.msra.mxu0 0
    %870 = vmatprep.subr.bf16.mxu0 0
    %871 = vmatpush1.bf16.msra.mxu0 0
    %872 = vmatprep.subr.bf16.mxu0 0
    %873 = vmatpush1.bf16.msra.mxu0 0
    %874 = vmatprep.subr.bf16.mxu0 0
    %875 = vmatpush1.bf16.msra.mxu0 0
    %876 = vmatprep.subr.bf16.mxu0 0
    %877 = vmatpush1.bf16.msra.mxu0 0
    %878 = vmatprep.subr.bf16.mxu0 0
    %879 = vmatpush1.bf16.msra.mxu0 0
    %880 = vmatprep.subr.bf16.mxu0 0
    %881 = vmatpush1.bf16.msra.mxu0 0
    %882 = vmatprep.subr.bf16.mxu0 0
    %883 = vmatpush1.bf16.msra.mxu0 0
    %884 = vmatprep.subr.bf16.mxu0 0
    %885 = vmatpush1.bf16.msra.mxu0 0
    %886 = vmatprep.subr.bf16.mxu0 0
    %887 = vmatpush1.bf16.msra.mxu0 0
    %888 = vmatprep.subr.bf16.mxu0 0
    %889 = vmatpush1.bf16.msra.mxu0 0
    %890 = vmatprep.mubr.bf16.mxu0 0
    %891 = vmatmul.mubr.bf16.gmra.mrb[0].mxu0 %v856
    %v892 = vpop.f32.mrb[0].mxu0
    %v893 = vadd.f32 0.0, %v892
    %v894 = vpop.f32.mrb[0].mxu0
    %v895 = vpop.f32.mrb[0].mxu0
    %v896 = vpop.f32.mrb[0].mxu0
    %897 = vdwg.mxu0
    %v898 = vadd.f32 %v375, %v893
    %v899 = vmul.f32 %v898, 0.5
    %v900 = vtanh.pop %v899
    %v901 = vmul.f32 %v900, 0.5
    %v902 = vadd.f32 %v901, 0.5
    %v903 = vtanh.pop %v898
    %v904 = vmul.f32 %v902, %v844
    %906 = vrot.lane.b32.xlu0 %v903, 64
    %v907 = vpop.permute.xlu0 %906
    %v909 = vmul.f32 %v902, %v907
    %911 = vrot.lane.b32.xlu0 %v909, 32
    %v912 = vpop.permute.xlu0 %911
    %v914 = vadd.f32 %v904, %v912
    %v915 = vtanh.pop %v914
    %917 = vrot.lane.b32.xlu0 %v915, 64
    %v918 = vpop.permute.xlu0 %917
    %v920 = vmul.f32 %v902, %v918
    %v921 = vpack.c.bf16 %v920, %v920
    %923 = vrot.lane.b32.xlu0 %v921, 32
    %v924 = vpop.permute.xlu0 %923
    %v926 = vsel %vm430, %v924, 0
    %928 = vmatprep.subr.bf16.mxu0 0
    %929 = vmatpush1.bf16.msra.mxu0 %v51
    %930 = vmatprep.subr.bf16.mxu0 0
    %931 = vmatpush1.bf16.msra.mxu0 %v52
    %932 = vmatprep.subr.bf16.mxu0 0
    %933 = vmatpush1.bf16.msra.mxu0 0
    %934 = vmatprep.subr.bf16.mxu0 0
    %935 = vmatpush1.bf16.msra.mxu0 0
    %936 = vmatprep.subr.bf16.mxu0 0
    %937 = vmatpush1.bf16.msra.mxu0 0
    %938 = vmatprep.subr.bf16.mxu0 0
    %939 = vmatpush1.bf16.msra.mxu0 0
    %940 = vmatprep.subr.bf16.mxu0 0
    %941 = vmatpush1.bf16.msra.mxu0 0
    %942 = vmatprep.subr.bf16.mxu0 0
    %943 = vmatpush1.bf16.msra.mxu0 0
    %944 = vmatprep.subr.bf16.mxu0 0
    %945 = vmatpush1.bf16.msra.mxu0 0
    %946 = vmatprep.subr.bf16.mxu0 0
    %947 = vmatpush1.bf16.msra.mxu0 0
    %948 = vmatprep.subr.bf16.mxu0 0
    %949 = vmatpush1.bf16.msra.mxu0 0
    %950 = vmatprep.subr.bf16.mxu0 0
    %951 = vmatpush1.bf16.msra.mxu0 0
    %952 = vmatprep.subr.bf16.mxu0 0
    %953 = vmatpush1.bf16.msra.mxu0 0
    %954 = vmatprep.subr.bf16.mxu0 0
    %955 = vmatpush1.bf16.msra.mxu0 0
    %956 = vmatprep.subr.bf16.mxu0 0
    %957 = vmatpush1.bf16.msra.mxu0 0
    %958 = vmatprep.subr.bf16.mxu0 0
    %959 = vmatpush1.bf16.msra.mxu0 0
    %960 = vmatprep.mubr.bf16.mxu0 0
    %961 = vmatmul.mubr.bf16.gmra.mrb[0].mxu0 %v926
    %v962 = vpop.f32.mrb[0].mxu0
    %v963 = vadd.f32 0.0, %v962
    %v964 = vpop.f32.mrb[0].mxu0
    %v965 = vpop.f32.mrb[0].mxu0
    %v966 = vpop.f32.mrb[0].mxu0
    %967 = vdwg.mxu0
    %v968 = vadd.f32 %v421, %v963
    %v969 = vmul.f32 %v968, 0.5
    %v970 = vtanh.pop %v969
    %v971 = vmul.f32 %v970, 0.5
    %v972 = vadd.f32 %v971, 0.5
    %v973 = vtanh.pop %v968
    %v974 = vmul.f32 %v972, %v914
    %976 = vrot.lane.b32.xlu0 %v973, 64
    %v977 = vpop.permute.xlu0 %976
    %v979 = vmul.f32 %v972, %v977
    %981 = vrot.lane.b32.xlu0 %v979, 32
    %v982 = vpop.permute.xlu0 %981
    %v984 = vadd.f32 %v974, %v982
    %v985 = vtanh.pop %v984
    %987 = vrot.lane.b32.xlu0 %v985, 64
    %v988 = vpop.permute.xlu0 %987
    %v990 = vmul.f32 %v972, %v988
    %992 = vrot.lane.b32.xlu0 %v990, 32
    %v993 = vpop.permute.xlu0 %992
    %vm995 = vcmask 254976
    %996 = vst.msk [vmem:[#allocation7] sm:$0x3] %vm995, %v993
    %998 = vrot.lane.b32.xlu0 %v984, 96
    %v999 = vpop.permute.xlu0 %998
    %s1001 = scalar_lea.vmem [#allocation7], 2
    %1002 = vst.msk [vmem:[%s1001] sm:$0x3] %vm995, %v999
    // Predicated region
    $region22: #{tpu_custom_call.1} parent=1 // pred_check
      _
    $region23: #{tpu_custom_call.1} parent=1 // pred_check_branch
      %1004 = sbr.rel (0) target = $region25
    $region24: #{tpu_custom_call.1} parent=1 // pred_region
      %s1006 = ssub.s32 64, 64
      %1007 = vsyncadd [#allocation4], %s1006
      %s1008 = sshll.u32 [#allocation7], 4
      %s1009 = int_to_ptr.vmem [resolvable:$true] %s1008
      %1014 = dma.vmem_to_hbm [thread:$0]  %s1009, 64, %s3, [#allocation4], 32, 32, 2
    $region25: #{tpu_custom_call.1} parent=1 // pred_fallthru
      _
    // Predicated region
    $region26: #{tpu_custom_call.1} parent=1 // pred_check
      _
    $region27: #{tpu_custom_call.1} parent=1 // pred_check_branch
      %1016 = sbr.rel (0) target = $region29
    $region28: #{tpu_custom_call.1} parent=1 // pred_region
      %1017 = dma.done [#allocation4], 64
    $region29: #{tpu_custom_call.1} parent=1 // pred_fallthru
      _
    %1018 = vsyncpa [#allocation3], 1
    %1019 = vsyncpa [#allocation6], 1
    %1020 = vsyncpa [#allocation4], 1

</llo_original>
